<compile_context>
chip_gen: v7x
topology: tpu7x:2x2x1
jax: 0.10.0
libtpu: 0.0.40
codegen_flags: <defaults>
</compile_context>

<pallas_src>
import jax
import jax.numpy as jnp
from jax.experimental import pallas as pl
from jax.experimental.pallas import tpu as pltpu

LN_EPS = 1e-5  # PyTorch nn.LayerNorm default


def _prenorm_kernel(x_ref, g_ref, b_ref, w_ref, wb_ref, o_ref, y_ref):
    # x_ref : (row_tile, D)  bf16   full feature row (LayerNorm needs all of D)
    # g_ref : (1, D) f32    b_ref : (1, D) f32
    # w_ref : (D, n_tile)   bf16   weight slab (whole W when resident)
    # wb_ref: (1, n_tile)   f32
    # o_ref : (row_tile, n_tile)
    # y_ref : (row_tile, D) bf16   VMEM scratch holding the LayerNorm output
    #
    # LayerNorm runs once per row tile (n == 0) and is cached in y_ref.  This
    # relies on the N axis being the TRAILING "arbitrary" grid dim (x block and
    # scratch stay resident while we sweep weight columns) and on scratch being
    # per-core under megacore sharding.  Do not reorder the grid or change
    # dimension_semantics without revisiting this.
    @pl.when(pl.program_id(1) == 0)
    def _():
        x = x_ref[...].astype(jnp.float32)
        inv_d = 1.0 / x.shape[-1]
        s1 = jnp.sum(x, axis=-1, keepdims=True)
        s2 = jnp.sum(x * x, axis=-1, keepdims=True)
        mean = s1 * inv_d
        var = jnp.maximum(s2 * inv_d - mean * mean, 0.0)   # biased, like PyTorch
        # Fold gamma into the rsqrt scale; rsqrt goes to the EUP slot.
        scale = jax.lax.rsqrt(var + LN_EPS) * g_ref[...].astype(jnp.float32)
        shift = b_ref[...].astype(jnp.float32) - mean * scale
        y_ref[...] = (x * scale + shift).astype(y_ref.dtype)

    # fn = Linear(D, D): bf16 x bf16 MXU matmul with f32 accumulation.
    out = jnp.dot(y_ref[...], w_ref[...], preferred_element_type=jnp.float32)
    out = out + wb_ref[...].astype(jnp.float32)
    o_ref[...] = out.astype(o_ref.dtype)


def _tpu_generation_params():
    """Returns (scoped_vmem_cap_bytes, streamed_w_row_tile, n_tile_alignment)."""
    kind = ""
    try:
        kind = jax.devices()[0].device_kind.lower()
    except Exception:
        pass
    if "v7" in kind:
        return int(0.85 * (64 << 20)), 512, 256    # 64 MiB physical VMEM / TC
    if "v6" in kind:
        return int(0.85 * (128 << 20)), 768, 256   # break-even ~ 918 TF/s / 1.4 TB/s
    if "v5" in kind:
        return int(0.85 * (128 << 20)), 256, 128   # break-even ~ 197 TF/s / 0.82 TB/s
    # Unknown chip: assume the tightest (v7x-like) limits.
    return int(0.85 * (64 << 20)), 512, 256


def _choose_n_tile(D, w_bytes, w_budget_bytes, n_align):
    """Pick the N tile for W.  Returns D (whole W resident, fetched once) when
    the double-buffer-counted slab fits the budget; otherwise the largest
    n_align multiple dividing D that fits."""
    if D % 128 != 0:
        return D  # irregular / tiny D: keep W whole (demo-scale path)
    if 2 * D * D * w_bytes <= w_budget_bytes:
        return D  # resident W -> constant index_map, single HBM fetch
    max_n = max(n_align, ((w_budget_bytes // (2 * D * w_bytes)) // n_align) * n_align)
    n = min(D, max_n)
    while n > n_align and D % n != 0:
        n -= n_align
    if D % n != 0:
        n = 128  # D is a multiple of 128, so this always divides
    return n


def prenorm_linear(x, gamma, beta, w, wb, *, row_tile=None, n_tile=None,
                   compute_dtype=jnp.bfloat16, out_dtype=None):
    """x: [B, S, D] -> fn(LayerNorm(x)) with fn = Linear(D, D) (weights w, wb)."""
    B, S, D = x.shape
    rows = B * S
    out_dtype = x.dtype if out_dtype is None else out_dtype

    vmem_cap, streamed_row_tile, n_align = _tpu_generation_params()

    w_bytes = jnp.dtype(compute_dtype).itemsize
    x_bytes = w_bytes                                  # x is fed in compute_dtype (bf16)
    y_bytes = w_bytes
    out_bytes = jnp.dtype(out_dtype).itemsize

    if n_tile is None:
        n_tile = _choose_n_tile(D, w_bytes, vmem_cap // 2, n_align)
    assert D % n_tile == 0, "n_tile must divide D"

    # Row tile: when W is resident a moderate tile (256) amortizes the ~0.35us
    # grid-step overhead; when W streams, use the generation break-even so the
    # inner loop stays MXU-bound rather than W-DMA-bound.
    if row_tile is None:
        row_tile = 256 if n_tile == D else streamed_row_tile
    row_tile = max(8, min(row_tile, pl.cdiv(rows, 8) * 8))
    row_tile = pl.cdiv(row_tile, 8) * 8

    def vmem_need(rt):
        return (2 * rt * D * x_bytes            # x tiles, double-buffered
                + 2 * rt * n_tile * out_bytes   # out tiles, double-buffered
                + 2 * D * n_tile * w_bytes      # W slab (counted double-buffered)
                + rt * D * y_bytes              # LayerNorm-output scratch
                + 6 * D * 4)                    # gamma / beta / wb f32 slabs

    # Shrink the row tile (never below 64) if the working set busts the budget.
    while vmem_need(row_tile) > vmem_cap and row_tile > 64:
        row_tile = max(64, ((row_tile // 2) + 7) // 8 * 8)
    # TODO(synk): for D so large that even row_tile=64 plus the smallest W slab
    # exceed VMEM (D >~ 8-16K on v7x), add K-tiling with an f32 accumulator
    # scratch + pl.when init on a new trailing K grid axis.

    rows_p = pl.cdiv(rows, row_tile) * row_tile

    x2 = x.reshape(rows, D).astype(compute_dtype)      # bf16 x: halves HBM read traffic
    if rows_p != rows:
        x2 = jnp.pad(x2, ((0, rows_p - rows), (0, 0)))

    gamma2 = gamma.reshape(1, D).astype(jnp.float32)
    beta2 = beta.reshape(1, D).astype(jnp.float32)
    w_c = w.astype(compute_dtype)                      # bf16 W into the MXU (cast once)
    wb2 = wb.reshape(1, D).astype(jnp.float32)

    grid = (rows_p // row_tile, D // n_tile)

    vmem_limit = int(min(max(vmem_need(row_tile) + (8 << 20), 32 << 20), vmem_cap))

    # Advisory cost: account for W being re-streamed once per row tile when
    # it is N-tiled (n_tile < D); fetched once when resident.
    w_fetches = 1 if n_tile == D else (rows_p // row_tile)
    cost = pl.CostEstimate(
        flops=2 * rows_p * D * D + 10 * rows_p * D,
        transcendentals=rows_p,
        bytes_accessed=(rows_p * D * x_bytes
                        + w_fetches * D * D * w_bytes
                        + rows_p * D * out_bytes
                        + 3 * D * 4),
    )

    out = pl.pallas_call(
        _prenorm_kernel,
        out_shape=jax.ShapeDtypeStruct((rows_p, D), out_dtype),
        grid_spec=pltpu.PrefetchScalarGridSpec(
            num_scalar_prefetch=0,
            grid=grid,
            in_specs=[
                pl.BlockSpec((row_tile, D), lambda i, n: (i, 0)),   # x rows (full D)
                pl.BlockSpec((1, D),        lambda i, n: (0, 0)),   # gamma
                pl.BlockSpec((1, D),        lambda i, n: (0, 0)),   # beta
                pl.BlockSpec((D, n_tile),   lambda i, n: (0, n)),   # W (bf16)
                pl.BlockSpec((1, n_tile),   lambda i, n: (0, n)),   # linear bias
            ],
            out_specs=pl.BlockSpec((row_tile, n_tile), lambda i, n: (i, n)),
            scratch_shapes=[pltpu.VMEM((row_tile, D), compute_dtype)],
        ),
        compiler_params=pltpu.CompilerParams(
            # Row axis parallel (megacore sharding); N axis MUST stay trailing
            # "arbitrary" for the y_ref caching scheme above.
            dimension_semantics=("parallel", "arbitrary"),
            vmem_limit_bytes=vmem_limit,
        ),
        cost_estimate=cost,
    )(x2, gamma2, beta2, w_c, wb2)

    if rows_p != rows:
        out = out[:rows]
    return out.reshape(B, S, D)


def _reference(x, gamma, beta, w, wb, compute_dtype=jnp.bfloat16):
    # Mirror the kernel's numerics: bf16 x / W into the MXU, f32 stats & accum.
    xf = x.astype(compute_dtype).astype(jnp.float32)
    mean = jnp.mean(xf, axis=-1, keepdims=True)
    var = jnp.mean((xf - mean) ** 2, axis=-1, keepdims=True)
    y = (xf - mean) * jax.lax.rsqrt(var + LN_EPS) * gamma + beta
    out = jnp.einsum("bsd,de->bse", y.astype(compute_dtype), w.astype(compute_dtype),
                     preferred_element_type=jnp.float32)
    return (out + wb).astype(x.dtype)


if __name__ == "__main__":
    key = jax.random.PRNGKey(0)
    # Lane-dense D (multiple of 128); rows = B*S = 256 = one row tile.
    B, S, D = 2, 128, 128

    kx, kg, kb, kw, kwb = jax.random.split(key, 5)
    x = jax.random.normal(kx, (B, S, D), dtype=jnp.float32)

    # LayerNorm params (slightly perturbed from the PyTorch default init so the
    # gamma/beta path is actually exercised).
    gamma = 1.0 + 0.1 * jax.random.normal(kg, (D,), dtype=jnp.float32)
    beta = 0.02 * jax.random.normal(kb, (D,), dtype=jnp.float32)

    # fn = Linear(D, D): deterministic synthetic weights.
    w = jax.random.normal(kw, (D, D), dtype=jnp.float32) * (1.0 / jnp.sqrt(D))
    wb = 0.02 * jax.random.normal(kwb, (D,), dtype=jnp.float32)

    out = jax.block_until_ready(prenorm_linear(x, gamma, beta, w, wb))

    ref = _reference(x, gamma, beta, w, wb)
    assert out.shape == (B, S, D)
    err = float(jnp.max(jnp.abs(out - ref)))
    assert err < 2e-2, f"mismatch vs reference: max abs err = {err}"

    print("KERNEL_OK")
</pallas_src>

<mosaic_0001>
module attributes {stable_mosaic.version = 11 : i64} {
  func.func @_prenorm_kernel(%arg0: i32, %arg1: i32, %arg2: memref<256x128xbf16, #tpu.memory_space<vmem>>, %arg3: memref<1x128xf32, #tpu.memory_space<vmem>>, %arg4: memref<1x128xf32, #tpu.memory_space<vmem>>, %arg5: memref<128x128xbf16, #tpu.memory_space<vmem>>, %arg6: memref<1x128xf32, #tpu.memory_space<vmem>>, %arg7: memref<256x128xf32, #tpu.memory_space<vmem>>, %arg8: memref<256x128xbf16, #tpu.memory_space<vmem>>) attributes {dimension_semantics = [#tpu.dimension_semantics<parallel>, #tpu.dimension_semantics<arbitrary>], iteration_bounds = array<i64: 1, 1>, scalar_prefetch = 0 : i64, scratch_operands = 1 : i64, tpu.core_type = #tpu.core_type<tc>, window_params = [{transform_indices = @transform_0, window_bounds = array<i64: 256, 128>}, {pipeline_mode = #tpu.pipeline_mode<synchronous>, transform_indices = @transform_1, window_bounds = array<i64: 1, 128>}, {pipeline_mode = #tpu.pipeline_mode<synchronous>, transform_indices = @transform_2, window_bounds = array<i64: 1, 128>}, {transform_indices = @transform_3, window_bounds = array<i64: 128, 128>}, {transform_indices = @transform_4, window_bounds = array<i64: 1, 128>}, {transform_indices = @transform_5, window_bounds = array<i64: 256, 128>}]} {
    %c0_i32 = arith.constant 0 : i32
    %0 = arith.cmpi eq, %arg1, %c0_i32 : i32
    %1 = arith.extui %0 : i1 to i32
    %c0_i32_0 = arith.constant 0 : i32
    %2 = arith.cmpi ne, %1, %c0_i32_0 : i32
    scf.if %2 {
      %c0_8 = arith.constant 0 : index
      %c0_9 = arith.constant 0 : index
      %10 = vector.load %arg2[%c0_8, %c0_9] : memref<256x128xbf16, #tpu.memory_space<vmem>>, vector<256x128xbf16>
      %11 = arith.extf %10 : vector<256x128xbf16> to vector<256x128xf32>
      %cst_10 = arith.constant dense<0.000000e+00> : vector<256xf32>
      %12 = vector.multi_reduction <add>, %11, %cst_10 [1] : vector<256x128xf32> to vector<256xf32>
      %13 = vector.shape_cast %12 : vector<256xf32> to vector<256x1xf32>
      %14 = arith.mulf %11, %11 : vector<256x128xf32>
      %cst_11 = arith.constant dense<0.000000e+00> : vector<256xf32>
      %15 = vector.multi_reduction <add>, %14, %cst_11 [1] : vector<256x128xf32> to vector<256xf32>
      %16 = vector.shape_cast %15 : vector<256xf32> to vector<256x1xf32>
      %cst_12 = arith.constant 7.812500e-03 : f32
      %17 = vector.broadcast %cst_12 : f32 to vector<256x1xf32>
      %18 = arith.mulf %13, %17 : vector<256x1xf32>
      %cst_13 = arith.constant 7.812500e-03 : f32
      %19 = vector.broadcast %cst_13 : f32 to vector<256x1xf32>
      %20 = arith.mulf %16, %19 : vector<256x1xf32>
      %21 = arith.mulf %18, %18 : vector<256x1xf32>
      %22 = arith.subf %20, %21 : vector<256x1xf32>
      %cst_14 = arith.constant 0.000000e+00 : f32
      %23 = vector.broadcast %cst_14 : f32 to vector<256x1xf32>
      %24 = arith.maximumf %22, %23 : vector<256x1xf32>
      %cst_15 = arith.constant 9.99999974E-6 : f32
      %25 = vector.broadcast %cst_15 : f32 to vector<256x1xf32>
      %26 = arith.addf %24, %25 : vector<256x1xf32>
      %27 = math.rsqrt %26 : vector<256x1xf32>
      %c0_16 = arith.constant 0 : index
      %c0_17 = arith.constant 0 : index
      %28 = vector.load %arg3[%c0_16, %c0_17] : memref<1x128xf32, #tpu.memory_space<vmem>>, vector<1x128xf32>
      %29 = vector.broadcast %27 : vector<256x1xf32> to vector<256x128xf32>
      %30 = vector.broadcast %28 : vector<1x128xf32> to vector<256x128xf32>
      %31 = arith.mulf %29, %30 : vector<256x128xf32>
      %c0_18 = arith.constant 0 : index
      %c0_19 = arith.constant 0 : index
      %32 = vector.load %arg4[%c0_18, %c0_19] : memref<1x128xf32, #tpu.memory_space<vmem>>, vector<1x128xf32>
      %33 = vector.broadcast %18 : vector<256x1xf32> to vector<256x128xf32>
      %34 = arith.mulf %33, %31 : vector<256x128xf32>
      %35 = vector.broadcast %32 : vector<1x128xf32> to vector<256x128xf32>
      %36 = arith.subf %35, %34 : vector<256x128xf32>
      %37 = arith.mulf %11, %31 : vector<256x128xf32>
      %38 = arith.addf %37, %36 : vector<256x128xf32>
      %39 = arith.truncf %38 : vector<256x128xf32> to vector<256x128xbf16>
      %c0_20 = arith.constant 0 : index
      %c0_21 = arith.constant 0 : index
      %40 = vector.load %arg8[%c0_20, %c0_21] : memref<256x128xbf16, #tpu.memory_space<vmem>>, vector<256x128xbf16>
      tpu.vector_store %arg8[%c0_20, %c0_21], %39 {strides = array<i32>} : memref<256x128xbf16, #tpu.memory_space<vmem>>, vector<256x128xbf16>,
    } else {
    }
    %c0 = arith.constant 0 : index
    %c0_1 = arith.constant 0 : index
    %3 = vector.load %arg8[%c0, %c0_1] : memref<256x128xbf16, #tpu.memory_space<vmem>>, vector<256x128xbf16>
    %c0_2 = arith.constant 0 : index
    %c0_3 = arith.constant 0 : index
    %4 = vector.load %arg5[%c0_2, %c0_3] : memref<128x128xbf16, #tpu.memory_space<vmem>>, vector<128x128xbf16>
    %cst = arith.constant dense<0.000000e+00> : vector<256x128xf32>
    %5 = tpu.matmul %3, %4, %cst {dimension_numbers = #tpu.dot_dimension_numbers<[1], [0], [0], [1], [0, 0, 1, 1], [], []>} : vector<256x128xbf16>, vector<128x128xbf16>, vector<256x128xf32> -> vector<256x128xf32>
    %c0_4 = arith.constant 0 : index
    %c0_5 = arith.constant 0 : index
    %6 = vector.load %arg6[%c0_4, %c0_5] : memref<1x128xf32, #tpu.memory_space<vmem>>, vector<1x128xf32>
    %7 = vector.broadcast %6 : vector<1x128xf32> to vector<256x128xf32>
    %8 = arith.addf %5, %7 : vector<256x128xf32>
    %c0_6 = arith.constant 0 : index
    %c0_7 = arith.constant 0 : index
    %9 = vector.load %arg7[%c0_6, %c0_7] : memref<256x128xf32, #tpu.memory_space<vmem>>, vector<256x128xf32>
    tpu.vector_store %arg7[%c0_6, %c0_7], %8 {strides = array<i32>} : memref<256x128xf32, #tpu.memory_space<vmem>>, vector<256x128xf32>,
    return
  }
  func.func @transform_0(%arg0: i32, %arg1: i32) -> (i32, i32) {
    %c0_i32 = arith.constant 0 : i32
    %c0_i32_0 = arith.constant 0 : i32
    return %arg0, %c0_i32 : i32, i32
  }
  func.func @transform_1(%arg0: i32, %arg1: i32) -> (i32, i32) {
    %c0_i32 = arith.constant 0 : i32
    %c0_i32_0 = arith.constant 0 : i32
    %c0_i32_1 = arith.constant 0 : i32
    return %c0_i32, %c0_i32_0 : i32, i32
  }
  func.func @transform_2(%arg0: i32, %arg1: i32) -> (i32, i32) {
    %c0_i32 = arith.constant 0 : i32
    %c0_i32_0 = arith.constant 0 : i32
    %c0_i32_1 = arith.constant 0 : i32
    return %c0_i32, %c0_i32_0 : i32, i32
  }
  func.func @transform_3(%arg0: i32, %arg1: i32) -> (i32, i32) {
    %c0_i32 = arith.constant 0 : i32
    %c0_i32_0 = arith.constant 0 : i32
    return %c0_i32, %arg1 : i32, i32
  }
  func.func @transform_4(%arg0: i32, %arg1: i32) -> (i32, i32) {
    %c0_i32 = arith.constant 0 : i32
    %c0_i32_0 = arith.constant 0 : i32
    return %c0_i32, %arg1 : i32, i32
  }
  func.func @transform_5(%arg0: i32, %arg1: i32) -> (i32, i32) {
    %c0_i32 = arith.constant 0 : i32
    return %arg0, %arg1 : i32, i32
  }
}

</mosaic_0001>

<llo_original>
// kernel: tpu_custom_call.1
$region0: #{tpu_custom_call.1}
  #allocation0 [shape = 'u32[]', space=smem, size = 0x4, offset = 0x4, fixed_abs, tag = 'smem constant byte address 0x4 - core index']
  #allocation1 [shape = 'u32[144,128]{1,0:T(1,128)}', space=vmem, size = 0x12000, scoped, tag = 'internal scratch']
  #allocation2 [shape = 'bf16[256,128]{1,0:T(16,128)(2,1)}', space=vmem, size = 0x10000, scoped, tag = 'scratch operand']
  %s0 = inlined_call_operand.hbm [shape: bf16[256,128], index: 0, kind: input, shape index: {}]
  %s1 = inlined_call_operand.vmem [shape: f32[1,128], index: 1, kind: input, shape index: {}]
  %s2 = inlined_call_operand.vmem [shape: f32[1,128], index: 2, kind: input, shape index: {}]
  %s3 = inlined_call_operand.hbm [shape: bf16[128,128], index: 3, kind: input, shape index: {}]
  %s4 = inlined_call_operand.vmem [shape: f32[1,128], index: 4, kind: input, shape index: {}]
  %s5 = inlined_call_operand.hbm [shape: f32[256,128], index: 5, kind: output, shape index: {}]
  %s6 = sld [smem:[#allocation0]]
  $region42: #{tpu_custom_call.1} parent=0
    _
  %s8 = ssub.s32 1, %s6
  %s9 = scalar_select 0, %s8, %s6
  $region1: #{tpu_custom_call.1} parent=0
    #allocation3 [shape = 'u8[65536]{0}', space=vmem, size = 0x10000, scoped, tag = 'input window, operand 0, single buffered']
    #allocation4 [shape = 's32[1]{0}', space=sflag, size = 0x4, scoped, tag = 'scoped memory for tpu_custom_call.1']
    #allocation5 [shape = 's32[1]{0}', space=sflag, size = 0x4, scoped, tag = 'scoped memory for tpu_custom_call.1']
    #allocation6 [shape = 'u8[32768]{0}', space=vmem, size = 0x8000, scoped, tag = 'input window, operand 3, single buffered']
    #allocation7 [shape = 's32[1]{0}', space=sflag, size = 0x4, scoped, tag = 'scoped memory for tpu_custom_call.1']
    #allocation8 [shape = 'u8[131072]{0}', space=vmem, size = 0x20000, scoped, tag = 'output window, operand 0, single buffered']
    %10 = vsyncpa [#allocation4], 0
    %11 = vsyncpa [#allocation7], 0
    %12 = vsyncpa [#allocation5], 0
    // Predicated region
    $region2: #{tpu_custom_call.1} parent=1 // pred_check
      _
    $region3: #{tpu_custom_call.1} parent=1 // pred_check_branch
      %14 = sbr.rel (0) target = $region5
    $region4: #{tpu_custom_call.1} parent=1 // pred_region
      %s16 = ssub.s32 2048, 2048
      %17 = vsyncadd [#allocation4], %s16
      %s18 = sshll.u32 [#allocation3], 4
      %s19 = int_to_ptr.vmem [resolvable:$true] %s18
      %24 = dma.hbm_to_vmem [thread:$0]  %s0, 2048, %s19, [#allocation4], 64, 64, 4
    $region5: #{tpu_custom_call.1} parent=1 // pred_fallthru
      _
    // Predicated region
    $region6: #{tpu_custom_call.1} parent=1 // pred_check
      _
    $region7: #{tpu_custom_call.1} parent=1 // pred_check_branch
      %26 = sbr.rel (0) target = $region9
    $region8: #{tpu_custom_call.1} parent=1 // pred_region
      _
    $region9: #{tpu_custom_call.1} parent=1 // pred_fallthru
      _
    // Predicated region
    $region10: #{tpu_custom_call.1} parent=1 // pred_check
      _
    $region11: #{tpu_custom_call.1} parent=1 // pred_check_branch
      %28 = sbr.rel (0) target = $region13
    $region12: #{tpu_custom_call.1} parent=1 // pred_region
      _
    $region13: #{tpu_custom_call.1} parent=1 // pred_fallthru
      _
    // Predicated region
    $region14: #{tpu_custom_call.1} parent=1 // pred_check
      _
    $region15: #{tpu_custom_call.1} parent=1 // pred_check_branch
      %30 = sbr.rel (0) target = $region17
    $region16: #{tpu_custom_call.1} parent=1 // pred_region
      %s32 = ssub.s32 1024, 1024
      %33 = vsyncadd [#allocation7], %s32
      %s34 = sshll.u32 [#allocation6], 4
      %s35 = int_to_ptr.vmem [resolvable:$true] %s34
      %40 = dma.hbm_to_vmem [thread:$0]  %s3, 1024, %s35, [#allocation7], 64, 64, 4
    $region17: #{tpu_custom_call.1} parent=1 // pred_fallthru
      _
    // Predicated region
    $region18: #{tpu_custom_call.1} parent=1 // pred_check
      _
    $region19: #{tpu_custom_call.1} parent=1 // pred_check_branch
      %42 = sbr.rel (0) target = $region21
    $region20: #{tpu_custom_call.1} parent=1 // pred_region
      _
    $region21: #{tpu_custom_call.1} parent=1 // pred_fallthru
      _
    // Predicated region
    $region22: #{tpu_custom_call.1} parent=1 // pred_check
      _
    $region23: #{tpu_custom_call.1} parent=1 // pred_check_branch
      %44 = sbr.rel (0) target = $region25
    $region24: #{tpu_custom_call.1} parent=1 // pred_region
      %45 = dma.done [#allocation4], 2048
    $region25: #{tpu_custom_call.1} parent=1 // pred_fallthru
      _
    // Predicated region
    $region26: #{tpu_custom_call.1} parent=1 // pred_check
      _
    $region27: #{tpu_custom_call.1} parent=1 // pred_check_branch
      %47 = sbr.rel (0) target = $region29
    $region28: #{tpu_custom_call.1} parent=1 // pred_region
      %48 = dma.done [#allocation7], 1024
    $region29: #{tpu_custom_call.1} parent=1 // pred_fallthru
      _
    %p50 = scmp.eq.s32.totalorder 0, 0
    // Predicated region
    $region30: #{tpu_custom_call.1} parent=1 // pred_check
      %p51 = pneg %p50
    $region31: #{tpu_custom_call.1} parent=1 // pred_check_branch
      %53 = sbr.rel (%p51) target = $region33
    $region32: #{tpu_custom_call.1} parent=1 // pred_region
      %v54 = vld [vmem:[#allocation3] sm:$0xf]
      %v55 = vld [vmem:[#allocation3 + $0x4] sm:$0xf]
      %v56 = vld [vmem:[#allocation3 + $0x8] sm:$0xf]
      %v57 = vld [vmem:[#allocation3 + $0xc] sm:$0xf]
      %v58 = vld [vmem:[#allocation3 + $0x10] sm:$0xf]
      %v59 = vld [vmem:[#allocation3 + $0x14] sm:$0xf]
      %v60 = vld [vmem:[#allocation3 + $0x18] sm:$0xf]
      %v61 = vld [vmem:[#allocation3 + $0x1c] sm:$0xf]
      %v62 = vld [vmem:[#allocation3 + $0x20] sm:$0xf]
      %v63 = vld [vmem:[#allocation3 + $0x24] sm:$0xf]
      %v64 = vld [vmem:[#allocation3 + $0x28] sm:$0xf]
      %v65 = vld [vmem:[#allocation3 + $0x2c] sm:$0xf]
      %v66 = vld [vmem:[#allocation3 + $0x30] sm:$0xf]
      %v67 = vld [vmem:[#allocation3 + $0x34] sm:$0xf]
      %v68 = vld [vmem:[#allocation3 + $0x38] sm:$0xf]
      %v69 = vld [vmem:[#allocation3 + $0x3c] sm:$0xf]
      %v70 = vld [vmem:[#allocation3 + $0x40] sm:$0xf]
      %v71 = vld [vmem:[#allocation3 + $0x44] sm:$0xf]
      %v72 = vld [vmem:[#allocation3 + $0x48] sm:$0xf]
      %v73 = vld [vmem:[#allocation3 + $0x4c] sm:$0xf]
      %v74 = vld [vmem:[#allocation3 + $0x50] sm:$0xf]
      %v75 = vld [vmem:[#allocation3 + $0x54] sm:$0xf]
      %v76 = vld [vmem:[#allocation3 + $0x58] sm:$0xf]
      %v77 = vld [vmem:[#allocation3 + $0x5c] sm:$0xf]
      %v78 = vld [vmem:[#allocation3 + $0x60] sm:$0xf]
      %v79 = vld [vmem:[#allocation3 + $0x64] sm:$0xf]
      %v80 = vld [vmem:[#allocation3 + $0x68] sm:$0xf]
      %v81 = vld [vmem:[#allocation3 + $0x6c] sm:$0xf]
      %v82 = vld [vmem:[#allocation3 + $0x70] sm:$0xf]
      %v83 = vld [vmem:[#allocation3 + $0x74] sm:$0xf]
      %v84 = vld [vmem:[#allocation3 + $0x78] sm:$0xf]
      %v85 = vld [vmem:[#allocation3 + $0x7c] sm:$0xf]
      %v86 = vunpack.c.l.bf16 %v54
      %v87 = vunpack.c.l.bf16 %v55
      %v88 = vunpack.c.l.bf16 %v56
      %v89 = vunpack.c.l.bf16 %v57
      %v90 = vunpack.c.l.bf16 %v58
      %v91 = vunpack.c.l.bf16 %v59
      %v92 = vunpack.c.l.bf16 %v60
      %v93 = vunpack.c.l.bf16 %v61
      %v94 = vunpack.c.l.bf16 %v62
      %v95 = vunpack.c.l.bf16 %v63
      %v96 = vunpack.c.l.bf16 %v64
      %v97 = vunpack.c.l.bf16 %v65
      %v98 = vunpack.c.l.bf16 %v66
      %v99 = vunpack.c.l.bf16 %v67
      %v100 = vunpack.c.l.bf16 %v68
      %v101 = vunpack.c.l.bf16 %v69
      %v102 = vunpack.c.l.bf16 %v70
      %v103 = vunpack.c.l.bf16 %v71
      %v104 = vunpack.c.l.bf16 %v72
      %v105 = vunpack.c.l.bf16 %v73
      %v106 = vunpack.c.l.bf16 %v74
      %v107 = vunpack.c.l.bf16 %v75
      %v108 = vunpack.c.l.bf16 %v76
      %v109 = vunpack.c.l.bf16 %v77
      %v110 = vunpack.c.l.bf16 %v78
      %v111 = vunpack.c.l.bf16 %v79
      %v112 = vunpack.c.l.bf16 %v80
      %v113 = vunpack.c.l.bf16 %v81
      %v114 = vunpack.c.l.bf16 %v82
      %v115 = vunpack.c.l.bf16 %v83
      %v116 = vunpack.c.l.bf16 %v84
      %v117 = vunpack.c.l.bf16 %v85
      %118 = vadd.xlane.f32.xlu0 %v86
      %v119 = vpop.xlane.xlu0 %118
      %120 = vadd.xlane.f32.xlu0 %v87
      %v121 = vpop.xlane.xlu0 %120
      %122 = vadd.xlane.f32.xlu0 %v88
      %v123 = vpop.xlane.xlu0 %122
      %124 = vadd.xlane.f32.xlu0 %v89
      %v125 = vpop.xlane.xlu0 %124
      %126 = vadd.xlane.f32.xlu0 %v90
      %v127 = vpop.xlane.xlu0 %126
      %128 = vadd.xlane.f32.xlu0 %v91
      %v129 = vpop.xlane.xlu0 %128
      %130 = vadd.xlane.f32.xlu0 %v92
      %v131 = vpop.xlane.xlu0 %130
      %132 = vadd.xlane.f32.xlu0 %v93
      %v133 = vpop.xlane.xlu0 %132
      %134 = vadd.xlane.f32.xlu0 %v94
      %v135 = vpop.xlane.xlu0 %134
      %136 = vadd.xlane.f32.xlu0 %v95
      %v137 = vpop.xlane.xlu0 %136
      %138 = vadd.xlane.f32.xlu0 %v96
      %v139 = vpop.xlane.xlu0 %138
      %140 = vadd.xlane.f32.xlu0 %v97
      %v141 = vpop.xlane.xlu0 %140
      %142 = vadd.xlane.f32.xlu0 %v98
      %v143 = vpop.xlane.xlu0 %142
      %144 = vadd.xlane.f32.xlu0 %v99
      %v145 = vpop.xlane.xlu0 %144
      %146 = vadd.xlane.f32.xlu0 %v100
      %v147 = vpop.xlane.xlu0 %146
      %148 = vadd.xlane.f32.xlu0 %v101
      %v149 = vpop.xlane.xlu0 %148
      %150 = vadd.xlane.f32.xlu0 %v102
      %v151 = vpop.xlane.xlu0 %150
      %152 = vadd.xlane.f32.xlu0 %v103
      %v153 = vpop.xlane.xlu0 %152
      %154 = vadd.xlane.f32.xlu0 %v104
      %v155 = vpop.xlane.xlu0 %154
      %156 = vadd.xlane.f32.xlu0 %v105
      %v157 = vpop.xlane.xlu0 %156
      %158 = vadd.xlane.f32.xlu0 %v106
      %v159 = vpop.xlane.xlu0 %158
      %160 = vadd.xlane.f32.xlu0 %v107
      %v161 = vpop.xlane.xlu0 %160
      %162 = vadd.xlane.f32.xlu0 %v108
      %v163 = vpop.xlane.xlu0 %162
      %164 = vadd.xlane.f32.xlu0 %v109
      %v165 = vpop.xlane.xlu0 %164
      %166 = vadd.xlane.f32.xlu0 %v110
      %v167 = vpop.xlane.xlu0 %166
      %168 = vadd.xlane.f32.xlu0 %v111
      %v169 = vpop.xlane.xlu0 %168
      %170 = vadd.xlane.f32.xlu0 %v112
      %v171 = vpop.xlane.xlu0 %170
      %172 = vadd.xlane.f32.xlu0 %v113
      %v173 = vpop.xlane.xlu0 %172
      %174 = vadd.xlane.f32.xlu0 %v114
      %v175 = vpop.xlane.xlu0 %174
      %176 = vadd.xlane.f32.xlu0 %v115
      %v177 = vpop.xlane.xlu0 %176
      %178 = vadd.xlane.f32.xlu0 %v116
      %v179 = vpop.xlane.xlu0 %178
      %180 = vadd.xlane.f32.xlu0 %v117
      %v181 = vpop.xlane.xlu0 %180
      %v182 = vmul.f32 %v86, %v86
      %v183 = vmul.f32 %v87, %v87
      %v184 = vmul.f32 %v88, %v88
      %v185 = vmul.f32 %v89, %v89
      %v186 = vmul.f32 %v90, %v90
      %v187 = vmul.f32 %v91, %v91
      %v188 = vmul.f32 %v92, %v92
      %v189 = vmul.f32 %v93, %v93
      %v190 = vmul.f32 %v94, %v94
      %v191 = vmul.f32 %v95, %v95
      %v192 = vmul.f32 %v96, %v96
      %v193 = vmul.f32 %v97, %v97
      %v194 = vmul.f32 %v98, %v98
      %v195 = vmul.f32 %v99, %v99
      %v196 = vmul.f32 %v100, %v100
      %v197 = vmul.f32 %v101, %v101
      %v198 = vmul.f32 %v102, %v102
      %v199 = vmul.f32 %v103, %v103
      %v200 = vmul.f32 %v104, %v104
      %v201 = vmul.f32 %v105, %v105
      %v202 = vmul.f32 %v106, %v106
      %v203 = vmul.f32 %v107, %v107
      %v204 = vmul.f32 %v108, %v108
      %v205 = vmul.f32 %v109, %v109
      %v206 = vmul.f32 %v110, %v110
      %v207 = vmul.f32 %v111, %v111
      %v208 = vmul.f32 %v112, %v112
      %v209 = vmul.f32 %v113, %v113
      %v210 = vmul.f32 %v114, %v114
      %v211 = vmul.f32 %v115, %v115
      %v212 = vmul.f32 %v116, %v116
      %v213 = vmul.f32 %v117, %v117
      %214 = vadd.xlane.f32.xlu0 %v182
      %v215 = vpop.xlane.xlu0 %214
      %216 = vadd.xlane.f32.xlu0 %v183
      %v217 = vpop.xlane.xlu0 %216
      %218 = vadd.xlane.f32.xlu0 %v184
      %v219 = vpop.xlane.xlu0 %218
      %220 = vadd.xlane.f32.xlu0 %v185
      %v221 = vpop.xlane.xlu0 %220
      %222 = vadd.xlane.f32.xlu0 %v186
      %v223 = vpop.xlane.xlu0 %222
      %224 = vadd.xlane.f32.xlu0 %v187
      %v225 = vpop.xlane.xlu0 %224
      %226 = vadd.xlane.f32.xlu0 %v188
      %v227 = vpop.xlane.xlu0 %226
      %228 = vadd.xlane.f32.xlu0 %v189
      %v229 = vpop.xlane.xlu0 %228
      %230 = vadd.xlane.f32.xlu0 %v190
      %v231 = vpop.xlane.xlu0 %230
      %232 = vadd.xlane.f32.xlu0 %v191
      %v233 = vpop.xlane.xlu0 %232
      %234 = vadd.xlane.f32.xlu0 %v192
      %v235 = vpop.xlane.xlu0 %234
      %236 = vadd.xlane.f32.xlu0 %v193
      %v237 = vpop.xlane.xlu0 %236
      %238 = vadd.xlane.f32.xlu0 %v194
      %v239 = vpop.xlane.xlu0 %238
      %240 = vadd.xlane.f32.xlu0 %v195
      %v241 = vpop.xlane.xlu0 %240
      %242 = vadd.xlane.f32.xlu0 %v196
      %v243 = vpop.xlane.xlu0 %242
      %244 = vadd.xlane.f32.xlu0 %v197
      %v245 = vpop.xlane.xlu0 %244
      %246 = vadd.xlane.f32.xlu0 %v198
      %v247 = vpop.xlane.xlu0 %246
      %248 = vadd.xlane.f32.xlu0 %v199
      %v249 = vpop.xlane.xlu0 %248
      %250 = vadd.xlane.f32.xlu0 %v200
      %v251 = vpop.xlane.xlu0 %250
      %252 = vadd.xlane.f32.xlu0 %v201
      %v253 = vpop.xlane.xlu0 %252
      %254 = vadd.xlane.f32.xlu0 %v202
      %v255 = vpop.xlane.xlu0 %254
      %256 = vadd.xlane.f32.xlu0 %v203
      %v257 = vpop.xlane.xlu0 %256
      %258 = vadd.xlane.f32.xlu0 %v204
      %v259 = vpop.xlane.xlu0 %258
      %260 = vadd.xlane.f32.xlu0 %v205
      %v261 = vpop.xlane.xlu0 %260
      %262 = vadd.xlane.f32.xlu0 %v206
      %v263 = vpop.xlane.xlu0 %262
      %264 = vadd.xlane.f32.xlu0 %v207
      %v265 = vpop.xlane.xlu0 %264
      %266 = vadd.xlane.f32.xlu0 %v208
      %v267 = vpop.xlane.xlu0 %266
      %268 = vadd.xlane.f32.xlu0 %v209
      %v269 = vpop.xlane.xlu0 %268
      %270 = vadd.xlane.f32.xlu0 %v210
      %v271 = vpop.xlane.xlu0 %270
      %272 = vadd.xlane.f32.xlu0 %v211
      %v273 = vpop.xlane.xlu0 %272
      %274 = vadd.xlane.f32.xlu0 %v212
      %v275 = vpop.xlane.xlu0 %274
      %276 = vadd.xlane.f32.xlu0 %v213
      %v277 = vpop.xlane.xlu0 %276
      %v278 = vmul.f32 %v119, 0.0078125
      %v279 = vmul.f32 %v121, 0.0078125
      %v280 = vmul.f32 %v123, 0.0078125
      %v281 = vmul.f32 %v125, 0.0078125
      %v282 = vmul.f32 %v127, 0.0078125
      %v283 = vmul.f32 %v129, 0.0078125
      %v284 = vmul.f32 %v131, 0.0078125
      %v285 = vmul.f32 %v133, 0.0078125
      %v286 = vmul.f32 %v135, 0.0078125
      %v287 = vmul.f32 %v137, 0.0078125
      %v288 = vmul.f32 %v139, 0.0078125
      %v289 = vmul.f32 %v141, 0.0078125
      %v290 = vmul.f32 %v143, 0.0078125
      %v291 = vmul.f32 %v145, 0.0078125
      %v292 = vmul.f32 %v147, 0.0078125
      %v293 = vmul.f32 %v149, 0.0078125
      %v294 = vmul.f32 %v151, 0.0078125
      %v295 = vmul.f32 %v153, 0.0078125
      %v296 = vmul.f32 %v155, 0.0078125
      %v297 = vmul.f32 %v157, 0.0078125
      %v298 = vmul.f32 %v159, 0.0078125
      %v299 = vmul.f32 %v161, 0.0078125
      %v300 = vmul.f32 %v163, 0.0078125
      %v301 = vmul.f32 %v165, 0.0078125
      %v302 = vmul.f32 %v167, 0.0078125
      %v303 = vmul.f32 %v169, 0.0078125
      %v304 = vmul.f32 %v171, 0.0078125
      %v305 = vmul.f32 %v173, 0.0078125
      %v306 = vmul.f32 %v175, 0.0078125
      %v307 = vmul.f32 %v177, 0.0078125
      %v308 = vmul.f32 %v179, 0.0078125
      %v309 = vmul.f32 %v181, 0.0078125
      %v310 = vmul.f32 %v215, 0.0078125
      %v311 = vmul.f32 %v217, 0.0078125
      %v312 = vmul.f32 %v219, 0.0078125
      %v313 = vmul.f32 %v221, 0.0078125
      %v314 = vmul.f32 %v223, 0.0078125
      %v315 = vmul.f32 %v225, 0.0078125
      %v316 = vmul.f32 %v227, 0.0078125
      %v317 = vmul.f32 %v229, 0.0078125
      %v318 = vmul.f32 %v231, 0.0078125
      %v319 = vmul.f32 %v233, 0.0078125
      %v320 = vmul.f32 %v235, 0.0078125
      %v321 = vmul.f32 %v237, 0.0078125
      %v322 = vmul.f32 %v239, 0.0078125
      %v323 = vmul.f32 %v241, 0.0078125
      %v324 = vmul.f32 %v243, 0.0078125
      %v325 = vmul.f32 %v245, 0.0078125
      %v326 = vmul.f32 %v247, 0.0078125
      %v327 = vmul.f32 %v249, 0.0078125
      %v328 = vmul.f32 %v251, 0.0078125
      %v329 = vmul.f32 %v253, 0.0078125
      %v330 = vmul.f32 %v255, 0.0078125
      %v331 = vmul.f32 %v257, 0.0078125
      %v332 = vmul.f32 %v259, 0.0078125
      %v333 = vmul.f32 %v261, 0.0078125
      %v334 = vmul.f32 %v263, 0.0078125
      %v335 = vmul.f32 %v265, 0.0078125
      %v336 = vmul.f32 %v267, 0.0078125
      %v337 = vmul.f32 %v269, 0.0078125
      %v338 = vmul.f32 %v271, 0.0078125
      %v339 = vmul.f32 %v273, 0.0078125
      %v340 = vmul.f32 %v275, 0.0078125
      %v341 = vmul.f32 %v277, 0.0078125
      %v342 = vmul.f32 %v278, %v278
      %v343 = vmul.f32 %v279, %v279
      %v344 = vmul.f32 %v280, %v280
      %v345 = vmul.f32 %v281, %v281
      %v346 = vmul.f32 %v282, %v282
      %v347 = vmul.f32 %v283, %v283
      %v348 = vmul.f32 %v284, %v284
      %v349 = vmul.f32 %v285, %v285
      %v350 = vmul.f32 %v286, %v286
      %v351 = vmul.f32 %v287, %v287
      %v352 = vmul.f32 %v288, %v288
      %v353 = vmul.f32 %v289, %v289
      %v354 = vmul.f32 %v290, %v290
      %v355 = vmul.f32 %v291, %v291
      %v356 = vmul.f32 %v292, %v292
      %v357 = vmul.f32 %v293, %v293
      %v358 = vmul.f32 %v294, %v294
      %v359 = vmul.f32 %v295, %v295
      %v360 = vmul.f32 %v296, %v296
      %v361 = vmul.f32 %v297, %v297
      %v362 = vmul.f32 %v298, %v298
      %v363 = vmul.f32 %v299, %v299
      %v364 = vmul.f32 %v300, %v300
      %v365 = vmul.f32 %v301, %v301
      %v366 = vmul.f32 %v302, %v302
      %v367 = vmul.f32 %v303, %v303
      %v368 = vmul.f32 %v304, %v304
      %v369 = vmul.f32 %v305, %v305
      %v370 = vmul.f32 %v306, %v306
      %v371 = vmul.f32 %v307, %v307
      %v372 = vmul.f32 %v308, %v308
      %v373 = vmul.f32 %v309, %v309
      %v374 = vsub.f32 %v310, %v342
      %v375 = vsub.f32 %v311, %v343
      %v376 = vsub.f32 %v312, %v344
      %v377 = vsub.f32 %v313, %v345
      %v378 = vsub.f32 %v314, %v346
      %v379 = vsub.f32 %v315, %v347
      %v380 = vsub.f32 %v316, %v348
      %v381 = vsub.f32 %v317, %v349
      %v382 = vsub.f32 %v318, %v350
      %v383 = vsub.f32 %v319, %v351
      %v384 = vsub.f32 %v320, %v352
      %v385 = vsub.f32 %v321, %v353
      %v386 = vsub.f32 %v322, %v354
      %v387 = vsub.f32 %v323, %v355
      %v388 = vsub.f32 %v324, %v356
      %v389 = vsub.f32 %v325, %v357
      %v390 = vsub.f32 %v326, %v358
      %v391 = vsub.f32 %v327, %v359
      %v392 = vsub.f32 %v328, %v360
      %v393 = vsub.f32 %v329, %v361
      %v394 = vsub.f32 %v330, %v362
      %v395 = vsub.f32 %v331, %v363
      %v396 = vsub.f32 %v332, %v364
      %v397 = vsub.f32 %v333, %v365
      %v398 = vsub.f32 %v334, %v366
      %v399 = vsub.f32 %v335, %v367
      %v400 = vsub.f32 %v336, %v368
      %v401 = vsub.f32 %v337, %v369
      %v402 = vsub.f32 %v338, %v370
      %v403 = vsub.f32 %v339, %v371
      %v404 = vsub.f32 %v340, %v372
      %v405 = vsub.f32 %v341, %v373
      %v406 = vmax.f32 %v374, 0.0
      %v407 = vmax.f32 %v375, 0.0
      %v408 = vmax.f32 %v376, 0.0
      %v409 = vmax.f32 %v377, 0.0
      %v410 = vmax.f32 %v378, 0.0
      %v411 = vmax.f32 %v379, 0.0
      %v412 = vmax.f32 %v380, 0.0
      %v413 = vmax.f32 %v381, 0.0
      %v414 = vmax.f32 %v382, 0.0
      %v415 = vmax.f32 %v383, 0.0
      %v416 = vmax.f32 %v384, 0.0
      %v417 = vmax.f32 %v385, 0.0
      %v418 = vmax.f32 %v386, 0.0
      %v419 = vmax.f32 %v387, 0.0
      %v420 = vmax.f32 %v388, 0.0
      %v421 = vmax.f32 %v389, 0.0
      %v422 = vmax.f32 %v390, 0.0
      %v423 = vmax.f32 %v391, 0.0
      %v424 = vmax.f32 %v392, 0.0
      %v425 = vmax.f32 %v393, 0.0
      %v426 = vmax.f32 %v394, 0.0
      %v427 = vmax.f32 %v395, 0.0
      %v428 = vmax.f32 %v396, 0.0
      %v429 = vmax.f32 %v397, 0.0
      %v430 = vmax.f32 %v398, 0.0
      %v431 = vmax.f32 %v399, 0.0
      %v432 = vmax.f32 %v400, 0.0
      %v433 = vmax.f32 %v401, 0.0
      %v434 = vmax.f32 %v402, 0.0
      %v435 = vmax.f32 %v403, 0.0
      %v436 = vmax.f32 %v404, 0.0
      %v437 = vmax.f32 %v405, 0.0
      %v438 = vadd.f32 %v406, 1e-05
      %v439 = vadd.f32 %v407, 1e-05
      %v440 = vadd.f32 %v408, 1e-05
      %v441 = vadd.f32 %v409, 1e-05
      %v442 = vadd.f32 %v410, 1e-05
      %v443 = vadd.f32 %v411, 1e-05
      %v444 = vadd.f32 %v412, 1e-05
      %v445 = vadd.f32 %v413, 1e-05
      %v446 = vadd.f32 %v414, 1e-05
      %v447 = vadd.f32 %v415, 1e-05
      %v448 = vadd.f32 %v416, 1e-05
      %v449 = vadd.f32 %v417, 1e-05
      %v450 = vadd.f32 %v418, 1e-05
      %v451 = vadd.f32 %v419, 1e-05
      %v452 = vadd.f32 %v420, 1e-05
      %v453 = vadd.f32 %v421, 1e-05
      %v454 = vadd.f32 %v422, 1e-05
      %v455 = vadd.f32 %v423, 1e-05
      %v456 = vadd.f32 %v424, 1e-05
      %v457 = vadd.f32 %v425, 1e-05
      %v458 = vadd.f32 %v426, 1e-05
      %v459 = vadd.f32 %v427, 1e-05
      %v460 = vadd.f32 %v428, 1e-05
      %v461 = vadd.f32 %v429, 1e-05
      %v462 = vadd.f32 %v430, 1e-05
      %v463 = vadd.f32 %v431, 1e-05
      %v464 = vadd.f32 %v432, 1e-05
      %v465 = vadd.f32 %v433, 1e-05
      %v466 = vadd.f32 %v434, 1e-05
      %v467 = vadd.f32 %v435, 1e-05
      %v468 = vadd.f32 %v436, 1e-05
      %v469 = vadd.f32 %v437, 1e-05
      %v470 = vrsqrt.pop %v438
      %v471 = vrsqrt.pop %v439
      %v472 = vrsqrt.pop %v440
      %v473 = vrsqrt.pop %v441
      %v474 = vrsqrt.pop %v442
      %v475 = vrsqrt.pop %v443
      %v476 = vrsqrt.pop %v444
      %v477 = vrsqrt.pop %v445
      %v478 = vrsqrt.pop %v446
      %v479 = vrsqrt.pop %v447
      %v480 = vrsqrt.pop %v448
      %v481 = vrsqrt.pop %v449
      %v482 = vrsqrt.pop %v450
      %v483 = vrsqrt.pop %v451
      %v484 = vrsqrt.pop %v452
      %v485 = vrsqrt.pop %v453
      %v486 = vrsqrt.pop %v454
      %v487 = vrsqrt.pop %v455
      %v488 = vrsqrt.pop %v456
      %v489 = vrsqrt.pop %v457
      %v490 = vrsqrt.pop %v458
      %v491 = vrsqrt.pop %v459
      %v492 = vrsqrt.pop %v460
      %v493 = vrsqrt.pop %v461
      %v494 = vrsqrt.pop %v462
      %v495 = vrsqrt.pop %v463
      %v496 = vrsqrt.pop %v464
      %v497 = vrsqrt.pop %v465
      %v498 = vrsqrt.pop %v466
      %v499 = vrsqrt.pop %v467
      %v500 = vrsqrt.pop %v468
      %v501 = vrsqrt.pop %v469
      %v502 = vld [vmem:[%s1] sm:$0x1]
      %v504 = vlaneseq
      %v505 = vshrl.u32 %v504, 7
      %v506 = vsub.s32 0, %v505
      %v507 = vrot.slane %v502, %v506
      %v509 = vmul.f32 %v470, %v507
      %v510 = vmul.f32 %v471, %v507
      %v511 = vmul.f32 %v472, %v507
      %v512 = vmul.f32 %v473, %v507
      %v513 = vmul.f32 %v474, %v507
      %v514 = vmul.f32 %v475, %v507
      %v515 = vmul.f32 %v476, %v507
      %v516 = vmul.f32 %v477, %v507
      %v517 = vmul.f32 %v478, %v507
      %v518 = vmul.f32 %v479, %v507
      %v519 = vmul.f32 %v480, %v507
      %v520 = vmul.f32 %v481, %v507
      %v521 = vmul.f32 %v482, %v507
      %v522 = vmul.f32 %v483, %v507
      %v523 = vmul.f32 %v484, %v507
      %v524 = vmul.f32 %v485, %v507
      %v525 = vmul.f32 %v486, %v507
      %v526 = vmul.f32 %v487, %v507
      %v527 = vmul.f32 %v488, %v507
      %v528 = vmul.f32 %v489, %v507
      %v529 = vmul.f32 %v490, %v507
      %v530 = vmul.f32 %v491, %v507
      %v531 = vmul.f32 %v492, %v507
      %v532 = vmul.f32 %v493, %v507
      %v533 = vmul.f32 %v494, %v507
      %v534 = vmul.f32 %v495, %v507
      %v535 = vmul.f32 %v496, %v507
      %v536 = vmul.f32 %v497, %v507
      %v537 = vmul.f32 %v498, %v507
      %v538 = vmul.f32 %v499, %v507
      %v539 = vmul.f32 %v500, %v507
      %v540 = vmul.f32 %v501, %v507
      %v541 = vld [vmem:[%s2] sm:$0x1]
      %v542 = vmul.f32 %v278, %v509
      %v543 = vmul.f32 %v279, %v510
      %v544 = vmul.f32 %v280, %v511
      %v545 = vmul.f32 %v281, %v512
      %v546 = vmul.f32 %v282, %v513
      %v547 = vmul.f32 %v283, %v514
      %v548 = vmul.f32 %v284, %v515
      %v549 = vmul.f32 %v285, %v516
      %v550 = vmul.f32 %v286, %v517
      %v551 = vmul.f32 %v287, %v518
      %v552 = vmul.f32 %v288, %v519
      %v553 = vmul.f32 %v289, %v520
      %v554 = vmul.f32 %v290, %v521
      %v555 = vmul.f32 %v291, %v522
      %v556 = vmul.f32 %v292, %v523
      %v557 = vmul.f32 %v293, %v524
      %v558 = vmul.f32 %v294, %v525
      %v559 = vmul.f32 %v295, %v526
      %v560 = vmul.f32 %v296, %v527
      %v561 = vmul.f32 %v297, %v528
      %v562 = vmul.f32 %v298, %v529
      %v563 = vmul.f32 %v299, %v530
      %v564 = vmul.f32 %v300, %v531
      %v565 = vmul.f32 %v301, %v532
      %v566 = vmul.f32 %v302, %v533
      %v567 = vmul.f32 %v303, %v534
      %v568 = vmul.f32 %v304, %v535
      %v569 = vmul.f32 %v305, %v536
      %v570 = vmul.f32 %v306, %v537
      %v571 = vmul.f32 %v307, %v538
      %v572 = vmul.f32 %v308, %v539
      %v573 = vmul.f32 %v309, %v540
      %v575 = vlaneseq
      %v576 = vshrl.u32 %v575, 7
      %v577 = vsub.s32 0, %v576
      %v578 = vrot.slane %v541, %v577
      %v580 = vsub.f32 %v578, %v542
      %v581 = vsub.f32 %v578, %v543
      %v582 = vsub.f32 %v578, %v544
      %v583 = vsub.f32 %v578, %v545
      %v584 = vsub.f32 %v578, %v546
      %v585 = vsub.f32 %v578, %v547
      %v586 = vsub.f32 %v578, %v548
      %v587 = vsub.f32 %v578, %v549
      %v588 = vsub.f32 %v578, %v550
      %v589 = vsub.f32 %v578, %v551
      %v590 = vsub.f32 %v578, %v552
      %v591 = vsub.f32 %v578, %v553
      %v592 = vsub.f32 %v578, %v554
      %v593 = vsub.f32 %v578, %v555
      %v594 = vsub.f32 %v578, %v556
      %v595 = vsub.f32 %v578, %v557
      %v596 = vsub.f32 %v578, %v558
      %v597 = vsub.f32 %v578, %v559
      %v598 = vsub.f32 %v578, %v560
      %v599 = vsub.f32 %v578, %v561
      %v600 = vsub.f32 %v578, %v562
      %v601 = vsub.f32 %v578, %v563
      %v602 = vsub.f32 %v578, %v564
      %v603 = vsub.f32 %v578, %v565
      %v604 = vsub.f32 %v578, %v566
      %v605 = vsub.f32 %v578, %v567
      %v606 = vsub.f32 %v578, %v568
      %v607 = vsub.f32 %v578, %v569
      %v608 = vsub.f32 %v578, %v570
      %v609 = vsub.f32 %v578, %v571
      %v610 = vsub.f32 %v578, %v572
      %v611 = vsub.f32 %v578, %v573
      %v612 = vmul.f32 %v86, %v509
      %v613 = vmul.f32 %v87, %v510
      %v614 = vmul.f32 %v88, %v511
      %v615 = vmul.f32 %v89, %v512
      %v616 = vmul.f32 %v90, %v513
      %v617 = vmul.f32 %v91, %v514
      %v618 = vmul.f32 %v92, %v515
      %v619 = vmul.f32 %v93, %v516
      %v620 = vmul.f32 %v94, %v517
      %v621 = vmul.f32 %v95, %v518
      %v622 = vmul.f32 %v96, %v519
      %v623 = vmul.f32 %v97, %v520
      %v624 = vmul.f32 %v98, %v521
      %v625 = vmul.f32 %v99, %v522
      %v626 = vmul.f32 %v100, %v523
      %v627 = vmul.f32 %v101, %v524
      %v628 = vmul.f32 %v102, %v525
      %v629 = vmul.f32 %v103, %v526
      %v630 = vmul.f32 %v104, %v527
      %v631 = vmul.f32 %v105, %v528
      %v632 = vmul.f32 %v106, %v529
      %v633 = vmul.f32 %v107, %v530
      %v634 = vmul.f32 %v108, %v531
      %v635 = vmul.f32 %v109, %v532
      %v636 = vmul.f32 %v110, %v533
      %v637 = vmul.f32 %v111, %v534
      %v638 = vmul.f32 %v112, %v535
      %v639 = vmul.f32 %v113, %v536
      %v640 = vmul.f32 %v114, %v537
      %v641 = vmul.f32 %v115, %v538
      %v642 = vmul.f32 %v116, %v539
      %v643 = vmul.f32 %v117, %v540
      %v644 = vadd.f32 %v612, %v580
      %v645 = vadd.f32 %v613, %v581
      %v646 = vadd.f32 %v614, %v582
      %v647 = vadd.f32 %v615, %v583
      %v648 = vadd.f32 %v616, %v584
      %v649 = vadd.f32 %v617, %v585
      %v650 = vadd.f32 %v618, %v586
      %v651 = vadd.f32 %v619, %v587
      %v652 = vadd.f32 %v620, %v588
      %v653 = vadd.f32 %v621, %v589
      %v654 = vadd.f32 %v622, %v590
      %v655 = vadd.f32 %v623, %v591
      %v656 = vadd.f32 %v624, %v592
      %v657 = vadd.f32 %v625, %v593
      %v658 = vadd.f32 %v626, %v594
      %v659 = vadd.f32 %v627, %v595
      %v660 = vadd.f32 %v628, %v596
      %v661 = vadd.f32 %v629, %v597
      %v662 = vadd.f32 %v630, %v598
      %v663 = vadd.f32 %v631, %v599
      %v664 = vadd.f32 %v632, %v600
      %v665 = vadd.f32 %v633, %v601
      %v666 = vadd.f32 %v634, %v602
      %v667 = vadd.f32 %v635, %v603
      %v668 = vadd.f32 %v636, %v604
      %v669 = vadd.f32 %v637, %v605
      %v670 = vadd.f32 %v638, %v606
      %v671 = vadd.f32 %v639, %v607
      %v672 = vadd.f32 %v640, %v608
      %v673 = vadd.f32 %v641, %v609
      %v674 = vadd.f32 %v642, %v610
      %v675 = vadd.f32 %v643, %v611
      %v676 = vpack.c.bf16 %v645, %v644
      %v677 = vpack.c.bf16 %v647, %v646
      %v678 = vpack.c.bf16 %v649, %v648
      %v679 = vpack.c.bf16 %v651, %v650
      %v680 = vpack.c.bf16 %v653, %v652
      %v681 = vpack.c.bf16 %v655, %v654
      %v682 = vpack.c.bf16 %v657, %v656
      %v683 = vpack.c.bf16 %v659, %v658
      %v684 = vpack.c.bf16 %v661, %v660
      %v685 = vpack.c.bf16 %v663, %v662
      %v686 = vpack.c.bf16 %v665, %v664
      %v687 = vpack.c.bf16 %v667, %v666
      %v688 = vpack.c.bf16 %v669, %v668
      %v689 = vpack.c.bf16 %v671, %v670
      %v690 = vpack.c.bf16 %v673, %v672
      %v691 = vpack.c.bf16 %v675, %v674
      %692 = vst [vmem:[#allocation2] sm:$0xff] %v676
      %693 = vst [vmem:[#allocation2 + $0x8] sm:$0xff] %v677
      %694 = vst [vmem:[#allocation2 + $0x10] sm:$0xff] %v678
      %695 = vst [vmem:[#allocation2 + $0x18] sm:$0xff] %v679
      %696 = vst [vmem:[#allocation2 + $0x20] sm:$0xff] %v680
      %697 = vst [vmem:[#allocation2 + $0x28] sm:$0xff] %v681
      %698 = vst [vmem:[#allocation2 + $0x30] sm:$0xff] %v682
      %699 = vst [vmem:[#allocation2 + $0x38] sm:$0xff] %v683
      %700 = vst [vmem:[#allocation2 + $0x40] sm:$0xff] %v684
      %701 = vst [vmem:[#allocation2 + $0x48] sm:$0xff] %v685
      %702 = vst [vmem:[#allocation2 + $0x50] sm:$0xff] %v686
      %703 = vst [vmem:[#allocation2 + $0x58] sm:$0xff] %v687
      %704 = vst [vmem:[#allocation2 + $0x60] sm:$0xff] %v688
      %705 = vst [vmem:[#allocation2 + $0x68] sm:$0xff] %v689
      %706 = vst [vmem:[#allocation2 + $0x70] sm:$0xff] %v690
      %707 = vst [vmem:[#allocation2 + $0x78] sm:$0xff] %v691
    $region33: #{tpu_custom_call.1} parent=1 // pred_fallthru
      _
    %v708 = vld [vmem:[#allocation2] sm:$0xff]
    %v709 = vld [vmem:[#allocation2 + $0x8] sm:$0xff]
    %v710 = vld [vmem:[#allocation2 + $0x10] sm:$0xff]
    %v711 = vld [vmem:[#allocation2 + $0x18] sm:$0xff]
    %v712 = vld [vmem:[#allocation2 + $0x20] sm:$0xff]
    %v713 = vld [vmem:[#allocation2 + $0x28] sm:$0xff]
    %v714 = vld [vmem:[#allocation2 + $0x30] sm:$0xff]
    %v715 = vld [vmem:[#allocation2 + $0x38] sm:$0xff]
    %v716 = vld [vmem:[#allocation2 + $0x40] sm:$0xff]
    %v717 = vld [vmem:[#allocation2 + $0x48] sm:$0xff]
    %v718 = vld [vmem:[#allocation2 + $0x50] sm:$0xff]
    %v719 = vld [vmem:[#allocation2 + $0x58] sm:$0xff]
    %v720 = vld [vmem:[#allocation2 + $0x60] sm:$0xff]
    %v721 = vld [vmem:[#allocation2 + $0x68] sm:$0xff]
    %v722 = vld [vmem:[#allocation2 + $0x70] sm:$0xff]
    %v723 = vld [vmem:[#allocation2 + $0x78] sm:$0xff]
    %v724 = vld [vmem:[#allocation6] sm:$0xf]
    %v725 = vld [vmem:[#allocation6 + $0x4] sm:$0xf]
    %v726 = vld [vmem:[#allocation6 + $0x8] sm:$0xf]
    %v727 = vld [vmem:[#allocation6 + $0xc] sm:$0xf]
    %v728 = vld [vmem:[#allocation6 + $0x10] sm:$0xf]
    %v729 = vld [vmem:[#allocation6 + $0x14] sm:$0xf]
    %v730 = vld [vmem:[#allocation6 + $0x18] sm:$0xf]
    %v731 = vld [vmem:[#allocation6 + $0x1c] sm:$0xf]
    %v732 = vld [vmem:[#allocation6 + $0x20] sm:$0xf]
    %v733 = vld [vmem:[#allocation6 + $0x24] sm:$0xf]
    %v734 = vld [vmem:[#allocation6 + $0x28] sm:$0xf]
    %v735 = vld [vmem:[#allocation6 + $0x2c] sm:$0xf]
    %v736 = vld [vmem:[#allocation6 + $0x30] sm:$0xf]
    %v737 = vld [vmem:[#allocation6 + $0x34] sm:$0xf]
    %v738 = vld [vmem:[#allocation6 + $0x38] sm:$0xf]
    %v739 = vld [vmem:[#allocation6 + $0x3c] sm:$0xf]
    %v740 = vld [vmem:[%s4] sm:$0x1]
    %v742 = vlaneseq
    %v743 = vshrl.u32 %v742, 7
    %v744 = vsub.s32 0, %v743
    %v745 = vrot.slane %v740, %v744
    %v763 = vunpack.c.l.b16 %v724
    %v764 = vunpack.c.l.b16 %v725
    %v765 = vunpack.c.l.b16 %v726
    %v766 = vunpack.c.l.b16 %v727
    %v767 = vunpack.c.l.b16 %v728
    %v768 = vunpack.c.l.b16 %v729
    %v769 = vunpack.c.l.b16 %v730
    %v770 = vunpack.c.l.b16 %v731
    %v771 = vunpack.c.l.b16 %v732
    %v772 = vunpack.c.l.b16 %v733
    %v773 = vunpack.c.l.b16 %v734
    %v774 = vunpack.c.l.b16 %v735
    %v775 = vunpack.c.l.b16 %v736
    %v776 = vunpack.c.l.b16 %v737
    %v777 = vunpack.c.l.b16 %v738
    %v778 = vunpack.c.l.b16 %v739
    %v779 = vpack.c.b16 %v764, %v763
    %v780 = vpack.c.b16 %v766, %v765
    %v781 = vpack.c.b16 %v768, %v767
    %v782 = vpack.c.b16 %v770, %v769
    %v783 = vpack.c.b16 %v772, %v771
    %v784 = vpack.c.b16 %v774, %v773
    %v785 = vpack.c.b16 %v776, %v775
    %v786 = vpack.c.b16 %v778, %v777
    %795 = vmatprep.subr.bf16.mxu0 0
    %796 = vmatpush1.bf16.msra.mxu0 %v779
    %797 = vmatprep.subr.bf16.mxu0 0
    %798 = vmatpush1.bf16.msra.mxu0 %v780
    %799 = vmatprep.subr.bf16.mxu0 0
    %800 = vmatpush1.bf16.msra.mxu0 %v781
    %801 = vmatprep.subr.bf16.mxu0 0
    %802 = vmatpush1.bf16.msra.mxu0 %v782
    %803 = vmatprep.subr.bf16.mxu0 0
    %804 = vmatpush1.bf16.msra.mxu0 %v783
    %805 = vmatprep.subr.bf16.mxu0 0
    %806 = vmatpush1.bf16.msra.mxu0 %v784
    %807 = vmatprep.subr.bf16.mxu0 0
    %808 = vmatpush1.bf16.msra.mxu0 %v785
    %809 = vmatprep.subr.bf16.mxu0 0
    %810 = vmatpush1.bf16.msra.mxu0 %v786
    %811 = vmatprep.subr.bf16.mxu0 0
    %812 = vmatpush1.bf16.msra.mxu0 0
    %813 = vmatprep.subr.bf16.mxu0 0
    %814 = vmatpush1.bf16.msra.mxu0 0
    %815 = vmatprep.subr.bf16.mxu0 0
    %816 = vmatpush1.bf16.msra.mxu0 0
    %817 = vmatprep.subr.bf16.mxu0 0
    %818 = vmatpush1.bf16.msra.mxu0 0
    %819 = vmatprep.subr.bf16.mxu0 0
    %820 = vmatpush1.bf16.msra.mxu0 0
    %821 = vmatprep.subr.bf16.mxu0 0
    %822 = vmatpush1.bf16.msra.mxu0 0
    %823 = vmatprep.subr.bf16.mxu0 0
    %824 = vmatpush1.bf16.msra.mxu0 0
    %825 = vmatprep.subr.bf16.mxu0 0
    %826 = vmatpush1.bf16.msra.mxu0 0
    %827 = vmatprep.mubr.bf16.mxu0 0
    %828 = vmatmul.mubr.bf16.gmra.mrb[0].mxu0 %v708
    %v829 = vpop.f32.mrb[0].mxu0
    %v830 = vadd.f32 %v745, %v829
    %v831 = vpop.f32.mrb[0].mxu0
    %v832 = vpop.f32.mrb[0].mxu0
    %v833 = vadd.f32 %v745, %v832
    %v834 = vpop.f32.mrb[0].mxu0
    %835 = vmatprep.mubr.bf16.mxu0 0
    %836 = vmatmul.mubr.bf16.gmra.mrb[0].mxu0 %v709
    %v837 = vpop.f32.mrb[0].mxu0
    %v838 = vadd.f32 %v745, %v837
    %v839 = vpop.f32.mrb[0].mxu0
    %v840 = vpop.f32.mrb[0].mxu0
    %v841 = vadd.f32 %v745, %v840
    %v842 = vpop.f32.mrb[0].mxu0
    %843 = vmatprep.mubr.bf16.mxu0 0
    %844 = vmatmul.mubr.bf16.gmra.mrb[0].mxu0 %v710
    %v845 = vpop.f32.mrb[0].mxu0
    %v846 = vadd.f32 %v745, %v845
    %v847 = vpop.f32.mrb[0].mxu0
    %v848 = vpop.f32.mrb[0].mxu0
    %v849 = vadd.f32 %v745, %v848
    %v850 = vpop.f32.mrb[0].mxu0
    %851 = vmatprep.mubr.bf16.mxu0 0
    %852 = vmatmul.mubr.bf16.gmra.mrb[0].mxu0 %v711
    %v853 = vpop.f32.mrb[0].mxu0
    %v854 = vadd.f32 %v745, %v853
    %v855 = vpop.f32.mrb[0].mxu0
    %v856 = vpop.f32.mrb[0].mxu0
    %v857 = vadd.f32 %v745, %v856
    %v858 = vpop.f32.mrb[0].mxu0
    %859 = vmatprep.mubr.bf16.mxu0 0
    %860 = vmatmul.mubr.bf16.gmra.mrb[0].mxu0 %v712
    %v861 = vpop.f32.mrb[0].mxu0
    %v862 = vadd.f32 %v745, %v861
    %v863 = vpop.f32.mrb[0].mxu0
    %v864 = vpop.f32.mrb[0].mxu0
    %v865 = vadd.f32 %v745, %v864
    %v866 = vpop.f32.mrb[0].mxu0
    %867 = vmatprep.mubr.bf16.mxu0 0
    %868 = vmatmul.mubr.bf16.gmra.mrb[0].mxu0 %v713
    %v869 = vpop.f32.mrb[0].mxu0
    %v870 = vadd.f32 %v745, %v869
    %v871 = vpop.f32.mrb[0].mxu0
    %v872 = vpop.f32.mrb[0].mxu0
    %v873 = vadd.f32 %v745, %v872
    %v874 = vpop.f32.mrb[0].mxu0
    %875 = vmatprep.mubr.bf16.mxu0 0
    %876 = vmatmul.mubr.bf16.gmra.mrb[0].mxu0 %v714
    %v877 = vpop.f32.mrb[0].mxu0
    %v878 = vadd.f32 %v745, %v877
    %v879 = vpop.f32.mrb[0].mxu0
    %v880 = vpop.f32.mrb[0].mxu0
    %v881 = vadd.f32 %v745, %v880
    %v882 = vpop.f32.mrb[0].mxu0
    %883 = vmatprep.mubr.bf16.mxu0 0
    %884 = vmatmul.mubr.bf16.gmra.mrb[0].mxu0 %v715
    %v885 = vpop.f32.mrb[0].mxu0
    %v886 = vadd.f32 %v745, %v885
    %v887 = vpop.f32.mrb[0].mxu0
    %v888 = vpop.f32.mrb[0].mxu0
    %v889 = vadd.f32 %v745, %v888
    %v890 = vpop.f32.mrb[0].mxu0
    %891 = vmatprep.mubr.bf16.mxu0 0
    %892 = vmatmul.mubr.bf16.gmra.mrb[0].mxu0 %v716
    %v893 = vpop.f32.mrb[0].mxu0
    %v894 = vadd.f32 %v745, %v893
    %v895 = vpop.f32.mrb[0].mxu0
    %v896 = vpop.f32.mrb[0].mxu0
    %v897 = vadd.f32 %v745, %v896
    %v898 = vpop.f32.mrb[0].mxu0
    %899 = vmatprep.mubr.bf16.mxu0 0
    %900 = vmatmul.mubr.bf16.gmra.mrb[0].mxu0 %v717
    %v901 = vpop.f32.mrb[0].mxu0
    %v902 = vadd.f32 %v745, %v901
    %v903 = vpop.f32.mrb[0].mxu0
    %v904 = vpop.f32.mrb[0].mxu0
    %v905 = vadd.f32 %v745, %v904
    %v906 = vpop.f32.mrb[0].mxu0
    %907 = vmatprep.mubr.bf16.mxu0 0
    %908 = vmatmul.mubr.bf16.gmra.mrb[0].mxu0 %v718
    %v909 = vpop.f32.mrb[0].mxu0
    %v910 = vadd.f32 %v745, %v909
    %v911 = vpop.f32.mrb[0].mxu0
    %v912 = vpop.f32.mrb[0].mxu0
    %v913 = vadd.f32 %v745, %v912
    %v914 = vpop.f32.mrb[0].mxu0
    %915 = vmatprep.mubr.bf16.mxu0 0
    %916 = vmatmul.mubr.bf16.gmra.mrb[0].mxu0 %v719
    %v917 = vpop.f32.mrb[0].mxu0
    %v918 = vadd.f32 %v745, %v917
    %v919 = vpop.f32.mrb[0].mxu0
    %v920 = vpop.f32.mrb[0].mxu0
    %v921 = vadd.f32 %v745, %v920
    %v922 = vpop.f32.mrb[0].mxu0
    %923 = vmatprep.mubr.bf16.mxu0 0
    %924 = vmatmul.mubr.bf16.gmra.mrb[0].mxu0 %v720
    %v925 = vpop.f32.mrb[0].mxu0
    %v926 = vadd.f32 %v745, %v925
    %v927 = vpop.f32.mrb[0].mxu0
    %v928 = vpop.f32.mrb[0].mxu0
    %v929 = vadd.f32 %v745, %v928
    %v930 = vpop.f32.mrb[0].mxu0
    %931 = vmatprep.mubr.bf16.mxu0 0
    %932 = vmatmul.mubr.bf16.gmra.mrb[0].mxu0 %v721
    %v933 = vpop.f32.mrb[0].mxu0
    %v934 = vadd.f32 %v745, %v933
    %v935 = vpop.f32.mrb[0].mxu0
    %v936 = vpop.f32.mrb[0].mxu0
    %v937 = vadd.f32 %v745, %v936
    %v938 = vpop.f32.mrb[0].mxu0
    %939 = vmatprep.mubr.bf16.mxu0 0
    %940 = vmatmul.mubr.bf16.gmra.mrb[0].mxu0 %v722
    %v941 = vpop.f32.mrb[0].mxu0
    %v942 = vadd.f32 %v745, %v941
    %v943 = vpop.f32.mrb[0].mxu0
    %v944 = vpop.f32.mrb[0].mxu0
    %v945 = vadd.f32 %v745, %v944
    %v946 = vpop.f32.mrb[0].mxu0
    %947 = vmatprep.mubr.bf16.mxu0 0
    %948 = vmatmul.mubr.bf16.gmra.mrb[0].mxu0 %v723
    %v949 = vpop.f32.mrb[0].mxu0
    %v950 = vadd.f32 %v745, %v949
    %v951 = vpop.f32.mrb[0].mxu0
    %v952 = vpop.f32.mrb[0].mxu0
    %v953 = vadd.f32 %v745, %v952
    %v954 = vpop.f32.mrb[0].mxu0
    %955 = vdwg.mxu0
    %956 = vst [vmem:[#allocation8] sm:$0xff] %v830
    %957 = vst [vmem:[#allocation8 + $0x8] sm:$0xff] %v833
    %958 = vst [vmem:[#allocation8 + $0x10] sm:$0xff] %v838
    %959 = vst [vmem:[#allocation8 + $0x18] sm:$0xff] %v841
    %960 = vst [vmem:[#allocation8 + $0x20] sm:$0xff] %v846
    %961 = vst [vmem:[#allocation8 + $0x28] sm:$0xff] %v849
    %962 = vst [vmem:[#allocation8 + $0x30] sm:$0xff] %v854
    %963 = vst [vmem:[#allocation8 + $0x38] sm:$0xff] %v857
    %964 = vst [vmem:[#allocation8 + $0x40] sm:$0xff] %v862
    %965 = vst [vmem:[#allocation8 + $0x48] sm:$0xff] %v865
    %966 = vst [vmem:[#allocation8 + $0x50] sm:$0xff] %v870
    %967 = vst [vmem:[#allocation8 + $0x58] sm:$0xff] %v873
    %968 = vst [vmem:[#allocation8 + $0x60] sm:$0xff] %v878
    %969 = vst [vmem:[#allocation8 + $0x68] sm:$0xff] %v881
    %970 = vst [vmem:[#allocation8 + $0x70] sm:$0xff] %v886
    %971 = vst [vmem:[#allocation8 + $0x78] sm:$0xff] %v889
    %972 = vst [vmem:[#allocation8 + $0x80] sm:$0xff] %v894
    %973 = vst [vmem:[#allocation8 + $0x88] sm:$0xff] %v897
    %974 = vst [vmem:[#allocation8 + $0x90] sm:$0xff] %v902
    %975 = vst [vmem:[#allocation8 + $0x98] sm:$0xff] %v905
    %976 = vst [vmem:[#allocation8 + $0xa0] sm:$0xff] %v910
    %977 = vst [vmem:[#allocation8 + $0xa8] sm:$0xff] %v913
    %978 = vst [vmem:[#allocation8 + $0xb0] sm:$0xff] %v918
    %979 = vst [vmem:[#allocation8 + $0xb8] sm:$0xff] %v921
    %980 = vst [vmem:[#allocation8 + $0xc0] sm:$0xff] %v926
    %981 = vst [vmem:[#allocation8 + $0xc8] sm:$0xff] %v929
    %982 = vst [vmem:[#allocation8 + $0xd0] sm:$0xff] %v934
    %983 = vst [vmem:[#allocation8 + $0xd8] sm:$0xff] %v937
    %984 = vst [vmem:[#allocation8 + $0xe0] sm:$0xff] %v942
    %985 = vst [vmem:[#allocation8 + $0xe8] sm:$0xff] %v945
    %986 = vst [vmem:[#allocation8 + $0xf0] sm:$0xff] %v950
    %987 = vst [vmem:[#allocation8 + $0xf8] sm:$0xff] %v953
    // Predicated region
    $region34: #{tpu_custom_call.1} parent=1 // pred_check
      _
    $region35: #{tpu_custom_call.1} parent=1 // pred_check_branch
      %989 = sbr.rel (0) target = $region37
    $region36: #{tpu_custom_call.1} parent=1 // pred_region
      %s991 = ssub.s32 4096, 4096
      %992 = vsyncadd [#allocation5], %s991
      %s993 = sshll.u32 [#allocation8], 4
      %s994 = int_to_ptr.vmem [resolvable:$true] %s993
      %999 = dma.vmem_to_hbm [thread:$0]  %s994, 4096, %s5, [#allocation5], 128, 128, 8
    $region37: #{tpu_custom_call.1} parent=1 // pred_fallthru
      _
    // Predicated region
    $region38: #{tpu_custom_call.1} parent=1 // pred_check
      _
    $region39: #{tpu_custom_call.1} parent=1 // pred_check_branch
      %1001 = sbr.rel (0) target = $region41
    $region40: #{tpu_custom_call.1} parent=1 // pred_region
      %1002 = dma.done [#allocation5], 4096
    $region41: #{tpu_custom_call.1} parent=1 // pred_fallthru
      _
    %1003 = vsyncpa [#allocation4], 1
    %1004 = vsyncpa [#allocation7], 1
    %1005 = vsyncpa [#allocation5], 1

</llo_original>
